<compile_context>
chip_gen: v7x
topology: tpu7x:2x2x1
jax: 0.10.0
libtpu: 0.0.40
codegen_flags: <defaults>
</compile_context>

<pallas_src>
import jax
import jax.numpy as jnp
from jax.experimental import pallas as pl
from jax.experimental.pallas import tpu as pltpu


# ----------------------------- kernels -------------------------------------

def _concat_relu_rows_kernel(x_ref, o_ref):
    # x_ref: (tb, CW), o_ref: (tb, 2*CW) — both lane-dense VMEM tiles.
    cw = x_ref.shape[1]
    r = jnp.maximum(x_ref[...], jnp.zeros((), x_ref.dtype))
    o_ref[:, :cw] = r   # first half
    o_ref[:, cw:] = r   # second half


def _concat_relu_tile_kernel(x_ref, o_ref):
    # x_ref / o_ref: (tb, tc) tiles; which output half is selected by the
    # output BlockSpec's index_map (halves grid axis).
    o_ref[...] = jnp.maximum(x_ref[...], jnp.zeros((), x_ref.dtype))


# --------------------------- sizing helpers ---------------------------------

def _sublane_pack(dtype):
    # rows per packed 32-bit sublane group: 8 for f32, 16 for bf16, 32 for i8.
    return max(8, 32 // jnp.dtype(dtype).itemsize)


def _tile_policy():
    """Returns (vmem_limit_bytes, input_tile_byte_budget) per chip generation."""
    cap = None
    try:
        info = pltpu.get_tpu_info()
        cap = getattr(info, "vmem_capacity_bytes", None)
    except Exception:
        cap = None
    if cap is not None and int(cap) >= (96 << 20):
        # v5e / v6e: 128 MiB physical VMEM — big tiles, raised scoped limit.
        return 100 << 20, 12 << 20   # resident ~6x input tile = ~72 MiB
    # v7x (64 MiB physical) or unknown: leave headroom for compiler scratch.
    return 48 << 20, 4 << 20         # resident ~6x input tile = ~24 MiB


def _round_up(n, m):
    return -(-n // m) * m


# ------------------------------ wrappers ------------------------------------

def _row_tiled(flat, pack, budget, vmem_limit):
    B, CW = flat.shape
    itemsize = jnp.dtype(flat.dtype).itemsize
    bytes_per_row = max(1, CW * itemsize)

    if B <= pack:
        tb = B                       # full-dim block, exempt from (8,128) rule
    else:
        rows_budget = max(pack, (budget // bytes_per_row) // pack * pack)
        # keep >= ~8 grid steps so in-DMA / compute / out-DMA overlap.
        rows_for_steps = max(pack, _round_up(-(-B // 8), pack))
        tb = max(pack, min(rows_budget, rows_for_steps))

    grid = (pl.cdiv(B, tb),)
    return pl.pallas_call(
        _concat_relu_rows_kernel,
        out_shape=jax.ShapeDtypeStruct((B, 2 * CW), flat.dtype),
        grid=grid,
        in_specs=[pl.BlockSpec((tb, CW), lambda i: (i, 0))],
        out_specs=pl.BlockSpec((tb, 2 * CW), lambda i: (i, 0)),
        compiler_params=pltpu.CompilerParams(
            dimension_semantics=("parallel",),
            vmem_limit_bytes=vmem_limit,
        ),
    )(flat)


def _col_tiled(flat, pack, budget, vmem_limit):
    """For very wide rows (CW % 128 == 0): tile columns so VMEM stays bounded."""
    B, CW = flat.shape
    itemsize = jnp.dtype(flat.dtype).itemsize

    if B <= pack:
        tb = B
    else:
        tb = max(pack, min(B // pack * pack, 8 * pack))

    max_tc = max(128, (budget // max(1, tb * itemsize)) // 128 * 128)
    tc = 128
    for g in range(CW // 128, 0, -1):
        cand = g * 128
        if CW % cand == 0 and cand <= max_tc:
            tc = cand
            break
    ncol = CW // tc

    # halves axis innermost: input block index (i, j) is unchanged across the
    # two halves -> the pipeline does not re-fetch the input tile.
    grid = (pl.cdiv(B, tb), ncol, 2)
    return pl.pallas_call(
        _concat_relu_tile_kernel,
        out_shape=jax.ShapeDtypeStruct((B, 2 * CW), flat.dtype),
        grid=grid,
        in_specs=[pl.BlockSpec((tb, tc), lambda i, j, h: (i, j))],
        out_specs=pl.BlockSpec((tb, tc), lambda i, j, h: (i, h * ncol + j)),
        compiler_params=pltpu.CompilerParams(
            dimension_semantics=("parallel", "arbitrary", "arbitrary"),
            vmem_limit_bytes=vmem_limit,
        ),
    )(flat)


def _pallas_concat_relu(flat):
    """flat: (B, CW) -> (B, 2*CW) = [relu(flat) | relu(flat)] per row."""
    B, CW = flat.shape
    itemsize = jnp.dtype(flat.dtype).itemsize
    pack = _sublane_pack(flat.dtype)
    vmem_limit, budget = _tile_policy()

    bytes_per_row = CW * itemsize
    # Wide rows: even a minimal (pack)-row tile exceeds the budget -> tile cols.
    if CW % 128 == 0 and bytes_per_row * pack > budget:
        return _col_tiled(flat, pack, budget, vmem_limit)
    return _row_tiled(flat, pack, budget, vmem_limit)


def model_forward(x):
    """Equivalent of the PyTorch Model.forward for x of shape (B, C, W)."""
    B = x.shape[0]
    flat = x.reshape(B, -1)            # free row-major reshape in HBM
    return _pallas_concat_relu(flat)   # already (B, 2*C*W); no trailing reshape


def _ref_forward(x):
    a = jnp.concatenate((x, x), axis=1)
    b = a.reshape(x.shape[0], -1)
    return jnp.maximum(b, 0.0)


# -------------------------------- tests -------------------------------------

if __name__ == "__main__":
    key = jax.random.PRNGKey(0)
    k1, k2, k3 = jax.random.split(key, 3)

    # 1) Module's toy shape (5, 3, 4): full-array block, grid = (1,).
    x_small = jax.random.normal(k1, (5, 3, 4), dtype=jnp.float32)
    out_small = model_forward(x_small)
    jax.block_until_ready(out_small)
    ref_small = _ref_forward(x_small)
    assert out_small.shape == (5, 24), out_small.shape
    assert jnp.array_equal(out_small, ref_small), "toy shape mismatch"

    # 2) Medium shape exercising the tiled, pipelined row path (grid > 1).
    x_med = jax.random.normal(k2, (512, 8, 32), dtype=jnp.float32)  # CW = 256
    out_med = model_forward(x_med)
    jax.block_until_ready(out_med)
    ref_med = _ref_forward(x_med)
    assert out_med.shape == (512, 512), out_med.shape
    assert jnp.array_equal(out_med, ref_med), "medium shape mismatch"

    # 3) Column-tiled path (forced with a tiny budget so it stays fast).
    flat_wide = jax.random.normal(k3, (64, 512), dtype=jnp.float32)
    out_wide = _col_tiled(flat_wide, pack=8, budget=32 * 1024,
                          vmem_limit=48 << 20)
    jax.block_until_ready(out_wide)
    r = jnp.maximum(flat_wide, 0.0)
    ref_wide = jnp.concatenate((r, r), axis=1)
    assert out_wide.shape == (64, 1024), out_wide.shape
    assert jnp.array_equal(out_wide, ref_wide), "col-tiled path mismatch"

    print("KERNEL_OK")
</pallas_src>

<mosaic_0001>
module attributes {stable_mosaic.version = 11 : i64} {
  func.func @_concat_relu_rows_kernel(%arg0: i32, %arg1: memref<5x12xf32, #tpu.memory_space<vmem>>, %arg2: memref<5x24xf32, #tpu.memory_space<vmem>>) attributes {dimension_semantics = [#tpu.dimension_semantics<parallel>], iteration_bounds = array<i64: 1>, scalar_prefetch = 0 : i64, scratch_operands = 0 : i64, tpu.core_type = #tpu.core_type<tc>, window_params = [{transform_indices = @transform_0, window_bounds = array<i64: 5, 12>}, {transform_indices = @transform_1, window_bounds = array<i64: 5, 24>}]} {
    %c0 = arith.constant 0 : index
    %c0_0 = arith.constant 0 : index
    %0 = vector.load %arg1[%c0, %c0_0] : memref<5x12xf32, #tpu.memory_space<vmem>>, vector<5x12xf32>
    %cst = arith.constant 0.000000e+00 : f32
    %1 = vector.broadcast %cst : f32 to vector<5x12xf32>
    %2 = arith.maximumf %0, %1 : vector<5x12xf32>
    %c0_1 = arith.constant 0 : index
    %c0_2 = arith.constant 0 : index
    %3 = vector.load %arg2[%c0_1, %c0_2] : memref<5x24xf32, #tpu.memory_space<vmem>>, vector<5x12xf32>
    tpu.vector_store %arg2[%c0_1, %c0_2], %2 {strides = array<i32>} : memref<5x24xf32, #tpu.memory_space<vmem>>, vector<5x12xf32>,
    %c0_3 = arith.constant 0 : index
    %c12 = arith.constant 12 : index
    %4 = vector.load %arg2[%c0_3, %c12] : memref<5x24xf32, #tpu.memory_space<vmem>>, vector<5x12xf32>
    tpu.vector_store %arg2[%c0_3, %c12], %2 {strides = array<i32>} : memref<5x24xf32, #tpu.memory_space<vmem>>, vector<5x12xf32>,
    return
  }
  func.func @transform_0(%arg0: i32) -> (i32, i32) {
    %c0_i32 = arith.constant 0 : i32
    %c0_i32_0 = arith.constant 0 : i32
    return %arg0, %c0_i32 : i32, i32
  }
  func.func @transform_1(%arg0: i32) -> (i32, i32) {
    %c0_i32 = arith.constant 0 : i32
    %c0_i32_0 = arith.constant 0 : i32
    return %arg0, %c0_i32 : i32, i32
  }
}

</mosaic_0001>

<llo_original>
// kernel: tpu_custom_call.1
$region0: #{tpu_custom_call.1}
  #allocation0 [shape = 'u32[]', space=smem, size = 0x4, offset = 0x4, fixed_abs, tag = 'smem constant byte address 0x4 - core index']
  #allocation1 [shape = 'u32[144,128]{1,0:T(1,128)}', space=vmem, size = 0x12000, scoped, tag = 'internal scratch']
  %s0 = inlined_call_operand.hbm [shape: f32[5,12], index: 0, kind: input, shape index: {}]
  %s1 = inlined_call_operand.hbm [shape: f32[5,24], index: 1, kind: output, shape index: {}]
  %s2 = sld [smem:[#allocation0]]
  $region18: #{tpu_custom_call.1} parent=0
    _
  %s4 = ssub.s32 1, %s2
  %s5 = scalar_select 0, %s4, %s2
  $region1: #{tpu_custom_call.1} parent=0
    #allocation2 [shape = 'u8[4096]{0}', space=vmem, size = 0x1000, scoped, tag = 'input window, operand 0, single buffered']
    #allocation3 [shape = 's32[1]{0}', space=sflag, size = 0x4, scoped, tag = 'scoped memory for tpu_custom_call.1']
    #allocation4 [shape = 's32[1]{0}', space=sflag, size = 0x4, scoped, tag = 'scoped memory for tpu_custom_call.1']
    #allocation5 [shape = 'u8[4096]{0}', space=vmem, size = 0x1000, scoped, tag = 'output window, operand 0, single buffered']
    %6 = vsyncpa [#allocation3], 0
    %7 = vsyncpa [#allocation4], 0
    // Predicated region
    $region2: #{tpu_custom_call.1} parent=1 // pred_check
      _
    $region3: #{tpu_custom_call.1} parent=1 // pred_check_branch
      %9 = sbr.rel (0) target = $region5
    $region4: #{tpu_custom_call.1} parent=1 // pred_region
      %s11 = ssub.s32 128, 128
      %12 = vsyncadd [#allocation3], %s11
      %s14 = sshll.u32 [#allocation2], 4
      %s15 = int_to_ptr.vmem [resolvable:$true] %s14
      %17 = dma.hbm_to_vmem [thread:$0]  %s0, 128, %s15, [#allocation3]
    $region5: #{tpu_custom_call.1} parent=1 // pred_fallthru
      _
    // Predicated region
    $region6: #{tpu_custom_call.1} parent=1 // pred_check
      _
    $region7: #{tpu_custom_call.1} parent=1 // pred_check_branch
      %19 = sbr.rel (0) target = $region9
    $region8: #{tpu_custom_call.1} parent=1 // pred_region
      %20 = dma.done [#allocation3], 128
    $region9: #{tpu_custom_call.1} parent=1 // pred_fallthru
      _
    %v21 = vld [vmem:[#allocation2] sm:$0x1f]
    %v22 = vmax.f32 %v21, 0.0
    %vm23 = vcmask 94208
    %24 = vst.msk [vmem:[#allocation5] sm:$0x1f] %vm23, %v22
    %26 = vrot.lane.b32.xlu0 %v22, 12
    %v27 = vpop.permute.xlu0 %26
    %vm29 = vcmask 192608
    %30 = vst.msk [vmem:[#allocation5] sm:$0x1f] %vm29, %v27
    // Predicated region
    $region10: #{tpu_custom_call.1} parent=1 // pred_check
      _
    $region11: #{tpu_custom_call.1} parent=1 // pred_check_branch
      %32 = sbr.rel (0) target = $region13
    $region12: #{tpu_custom_call.1} parent=1 // pred_region
      %s34 = ssub.s32 128, 128
      %35 = vsyncadd [#allocation4], %s34
      %s37 = sshll.u32 [#allocation5], 4
      %s38 = int_to_ptr.vmem [resolvable:$true] %s37
      %40 = dma.vmem_to_hbm [thread:$0]  %s38, 128, %s1, [#allocation4]
    $region13: #{tpu_custom_call.1} parent=1 // pred_fallthru
      _
    // Predicated region
    $region14: #{tpu_custom_call.1} parent=1 // pred_check
      _
    $region15: #{tpu_custom_call.1} parent=1 // pred_check_branch
      %42 = sbr.rel (0) target = $region17
    $region16: #{tpu_custom_call.1} parent=1 // pred_region
      %43 = dma.done [#allocation4], 128
    $region17: #{tpu_custom_call.1} parent=1 // pred_fallthru
      _
    %44 = vsyncpa [#allocation3], 1
    %45 = vsyncpa [#allocation4], 1

</llo_original>
